<compile_context>
chip_gen: v7x
topology: tpu7x:2x2x1
jax: 0.10.0
libtpu: 0.0.40
codegen_flags: <defaults>
</compile_context>

<pallas_src>
import functools

import jax
import jax.numpy as jnp
from jax.experimental import pallas as pl
from jax.experimental.pallas import tpu as pltpu

_LANES = 128
_MAX_BLOCK_BYTES = 8 * 1024 * 1024  # per-buffer ceiling; in+out double-buffered <= 32 MiB


def _hswish_kernel(x_ref, o_ref):
    x = x_ref[...]
    # relu6(x + 3) == clip(x + 3, 0, 6). Python-float constants stay weakly
    # typed, so bf16 runs natively on the v6e/v7x VPU; v5e has no bf16 VALU and
    # promotes to f32 internally — numerically fine and still HBM-bound.
    # (Multiplying by 1/6 instead of dividing by 6 differs from torch by <=1 ulp.)
    o_ref[...] = x * jnp.clip(x + 3.0, 0.0, 6.0) * (1.0 / 6.0)


def _hswish_jnp(x):
    # Fallback for tiny inputs and dtypes the kernel does not handle natively
    # (int8/fp8 would need explicit casts in the kernel; compute in f32 there).
    if jnp.issubdtype(x.dtype, jnp.floating) and jnp.dtype(x.dtype).itemsize >= 2:
        return x * jnp.clip(x + 3.0, 0.0, 6.0) * (1.0 / 6.0)
    xf = x.astype(jnp.float32)
    return (xf * jnp.clip(xf + 3.0, 0.0, 6.0) * (1.0 / 6.0)).astype(x.dtype)


def _sublane_packing(dtype) -> int:
    # 8 sublanes for 4-byte dtypes, 16 for 2-byte (bf16/f16).
    return max(8, 32 // max(1, jnp.dtype(dtype).itemsize))


def _round_up(x: int, m: int) -> int:
    return ((x + m - 1) // m) * m


def hswish(x: jax.Array, *, tile_rows: int = 8192,
           min_pallas_bytes: int = 256 * 1024,
           in_place: bool = False) -> jax.Array:
    """Elementwise hard-swish matching torch: x * relu6(x + 3) / 6.

    Set in_place=True only when the caller donates x (e.g. jit donate_argnums);
    it enables input_output_aliases={0: 0} so the output reuses x's buffer.
    """
    orig_shape = x.shape
    dtype = x.dtype
    n = x.size
    itemsize = jnp.dtype(dtype).itemsize

    # Small-input / unsupported-dtype bypass: launch + pipeline prologue exceed
    # the work; XLA's fused elementwise is strictly better at these sizes.
    use_pallas = (jnp.issubdtype(dtype, jnp.floating) and itemsize >= 2
                  and n > 0 and n * itemsize >= min_pallas_bytes)
    if not use_pallas:
        return _hswish_jnp(x)

    flat = x.reshape(-1)
    n_tail = n % _LANES          # <128-element remainder, handled with plain jnp
    n_main = n - n_tail
    packing = _sublane_packing(dtype)
    rows = n_main // _LANES
    if rows < packing:           # not even one full sublane tile of aligned data
        return _hswish_jnp(x)

    # Aligned prefix as a lane-dense 2D slab (rows, 128): a reshape (and prefix
    # slice) of a contiguous array is layout plumbing, not an extra HBM pass.
    main = flat[:n_main] if n_tail else flat
    x2d = main.reshape(rows, _LANES)

    # ---- Tile / grid selection -------------------------------------------
    # Per-buffer block ceiling (~8 MiB): safe on v7x's 64 MiB VMEM and 4 MiB
    # blocks already sit at ~85%+ of HBM roofline, so bigger buys nothing.
    max_block_rows = max(packing,
                         (_MAX_BLOCK_BYTES // (_LANES * itemsize)) // packing * packing)
    tr_req = min(_round_up(max(tile_rows, packing), packing), max_block_rows)

    # Target an even step count so both v7x TensorCores get equal work; prefer
    # >=4 steps on larger inputs so each core still has >=2 blocks to pipeline.
    min_steps = 4 if rows * _LANES * itemsize >= 4 * (1 << 20) else 2
    steps = max(min_steps, pl.cdiv(rows, tr_req))
    steps += steps % 2                                   # force even
    tr = max(packing, min(_round_up(pl.cdiv(rows, steps), packing), max_block_rows))
    grid_steps = pl.cdiv(rows, tr)
    # Rounding tr up to the sublane packing can shave a step; nudge tr back
    # down until the realized step count is even again (or tr hits packing).
    while grid_steps % 2 and tr > packing:
        tr -= packing
        grid_steps = pl.cdiv(rows, tr)
    grid = (grid_steps,)

    extra_kwargs = {}
    if in_place:
        # Only beneficial when x is donated; otherwise XLA inserts a copy.
        extra_kwargs["input_output_aliases"] = {0: 0}

    out2d = pl.pallas_call(
        _hswish_kernel,
        out_shape=jax.ShapeDtypeStruct((rows, _LANES), dtype),
        grid_spec=pl.GridSpec(
            grid=grid,
            in_specs=[pl.BlockSpec((tr, _LANES), lambda i: (i, 0))],
            out_specs=pl.BlockSpec((tr, _LANES), lambda i: (i, 0)),
        ),
        compiler_params=pltpu.CompilerParams(
            dimension_semantics=("parallel",),
            # Explicit 32 MiB: v5e's scoped default is 16 MiB which exactly
            # equals the default working set; keep headroom, but never push
            # toward v7x's 64 MiB physical limit.
            vmem_limit_bytes=32 * 1024 * 1024,
        ),
        cost_estimate=pl.CostEstimate(
            flops=5 * n_main,
            transcendentals=0,
            bytes_accessed=2 * n_main * itemsize,
        ),
        **extra_kwargs,
    )(x2d)

    out_flat = out2d.reshape(-1)
    if n_tail:
        # Tail (<128 elems) with plain jnp + one output-side concatenate keeps
        # the hot path at one read + one write (no full-array pad/slice copies).
        out_flat = jnp.concatenate([out_flat, _hswish_jnp(flat[n_main:])])
    return out_flat.reshape(orig_shape)


def hswish_ref(x):
    xf = x.astype(jnp.float32)
    return xf * jnp.clip(xf + 3.0, 0.0, 6.0) / 6.0


if __name__ == "__main__":
    key = jax.random.PRNGKey(0)
    k1, k2, k3, k4 = jax.random.split(key, 4)

    hswish_jit = jax.jit(hswish,
                         static_argnames=("tile_rows", "min_pallas_bytes", "in_place"))
    # Donated input + in_place=True: output aliases the input buffer in place.
    hswish_inplace = jax.jit(lambda a: hswish(a, in_place=True), donate_argnums=(0,))

    # Small NCHW input consistent with the module (batch=2, channels=4, 16x16).
    # Force the Pallas path (bypass disabled) so the kernel itself runs on TPU.
    x = jax.random.normal(k1, (2, 4, 16, 16), dtype=jnp.float32) * 4.0
    y = hswish_jit(x, min_pallas_bytes=0)
    jax.block_until_ready(y)
    assert y.shape == x.shape and y.dtype == x.dtype
    assert jnp.allclose(y, hswish_ref(x), atol=1e-6, rtol=1e-5)

    # Unaligned size (n % 128 != 0): aligned-prefix kernel + jnp tail stitch.
    x_tail = jax.random.normal(k2, (1061,), dtype=jnp.float32) * 4.0
    y_tail = hswish_jit(x_tail, min_pallas_bytes=0)
    jax.block_until_ready(y_tail)
    assert jnp.allclose(y_tail, hswish_ref(x_tail), atol=1e-6, rtol=1e-5)

    # Larger f32 input: even multi-step parallel grid; demonstrate in-place
    # aliasing with a donated input buffer.
    x_big = jax.random.normal(k3, (4, 32, 64, 64), dtype=jnp.float32) * 4.0
    y_big_ref = hswish_ref(x_big)
    y_big = hswish_inplace(x_big)
    jax.block_until_ready(y_big)
    assert jnp.allclose(y_big, y_big_ref, atol=1e-6, rtol=1e-5)
    del x_big  # buffer was donated

    # bf16 input: dtype-aware sublane packing (16 rows per vreg).
    x_bf16 = (jax.random.normal(k4, (2, 32, 64, 64), dtype=jnp.float32)
              * 4.0).astype(jnp.bfloat16)
    y_bf16 = hswish_jit(x_bf16)
    jax.block_until_ready(y_bf16)
    assert y_bf16.dtype == jnp.bfloat16
    assert jnp.allclose(y_bf16.astype(jnp.float32), hswish_ref(x_bf16),
                        atol=5e-2, rtol=5e-2)

    print("KERNEL_OK")
</pallas_src>

<mosaic_0001>
module attributes {stable_mosaic.version = 11 : i64} {
  func.func @_hswish_kernel(%arg0: i32, %arg1: memref<8x128xf32, #tpu.memory_space<vmem>>, %arg2: memref<8x128xf32, #tpu.memory_space<vmem>>) attributes {dimension_semantics = [#tpu.dimension_semantics<parallel>], iteration_bounds = array<i64: 2>, scalar_prefetch = 0 : i64, scratch_operands = 0 : i64, tpu.core_type = #tpu.core_type<tc>, window_params = [{transform_indices = @transform_0, window_bounds = array<i64: 8, 128>}, {transform_indices = @transform_1, window_bounds = array<i64: 8, 128>}]} {
    %c0 = arith.constant 0 : index
    %c0_0 = arith.constant 0 : index
    %0 = vector.load %arg1[%c0, %c0_0] : memref<8x128xf32, #tpu.memory_space<vmem>>, vector<8x128xf32>
    %cst = arith.constant 3.000000e+00 : f32
    %1 = vector.broadcast %cst : f32 to vector<8x128xf32>
    %2 = arith.addf %0, %1 : vector<8x128xf32>
    %cst_1 = arith.constant 0.000000e+00 : f32
    %cst_2 = arith.constant 6.000000e+00 : f32
    %3 = vector.broadcast %cst_1 : f32 to vector<8x128xf32>
    %4 = arith.maximumf %3, %2 : vector<8x128xf32>
    %5 = vector.broadcast %cst_2 : f32 to vector<8x128xf32>
    %6 = arith.minimumf %5, %4 : vector<8x128xf32>
    %7 = arith.mulf %0, %6 : vector<8x128xf32>
    %cst_3 = arith.constant 0.166666672 : f32
    %8 = vector.broadcast %cst_3 : f32 to vector<8x128xf32>
    %9 = arith.mulf %7, %8 : vector<8x128xf32>
    %c0_4 = arith.constant 0 : index
    %c0_5 = arith.constant 0 : index
    %10 = vector.load %arg2[%c0_4, %c0_5] : memref<8x128xf32, #tpu.memory_space<vmem>>, vector<8x128xf32>
    tpu.vector_store %arg2[%c0_4, %c0_5], %9 {strides = array<i32>} : memref<8x128xf32, #tpu.memory_space<vmem>>, vector<8x128xf32>,
    return
  }
  func.func @transform_0(%arg0: i32) -> (i32, i32) {
    %c0_i32 = arith.constant 0 : i32
    %c0_i32_0 = arith.constant 0 : i32
    return %arg0, %c0_i32 : i32, i32
  }
  func.func @transform_1(%arg0: i32) -> (i32, i32) {
    %c0_i32 = arith.constant 0 : i32
    %c0_i32_0 = arith.constant 0 : i32
    return %arg0, %c0_i32 : i32, i32
  }
}

</mosaic_0001>

<llo_original>
// kernel: hswish.1
$region0: #{hswish.1}
  #allocation0 [shape = 'u32[]', space=smem, size = 0x4, offset = 0x4, fixed_abs, tag = 'smem constant byte address 0x4 - core index']
  #allocation1 [shape = 'u32[144,128]{1,0:T(1,128)}', space=vmem, size = 0x12000, scoped, tag = 'internal scratch']
  %s0 = inlined_call_operand.vmem [shape: f32[16,128], index: 0, kind: input, shape index: {}]
  %s1 = inlined_call_operand.vmem [shape: f32[16,128], index: 1, kind: output, shape index: {}]
  %s2 = sld [smem:[#allocation0]]
  $region37: #{hswish.1} parent=0
    _
  %s4 = ssub.s32 1, %s2
  %s5 = scalar_select 0, %s4, %s2
  loop: start=0, step=1, limit=4
  $region2: #{hswish.1} parent=0 // loop_pre_header
    _
  $region3: #{hswish.1} parent=0 // loop_header
    %s7 = sphi 0, %s11
    %p8 = scmp.ge.s32.totalorder %s7, 4
    %s17 = sphi 0, %s19
    %s20 = sphi 0, %s17
    %s21 = sphi 0, %s20
    %s37 = sphi 0, %s21
    %s43 = sphi 0, %s45
    %s46 = sphi 0, %s43
    %s47 = sphi 0, %s46
    %s63 = sphi 0, %s47
  $region4: #{hswish.1} parent=0 // loop_header_branch
    %10 = sbr.rel (%p8) target = $region8
  $region5: #{hswish.1} parent=0 // loop_body
    %s12 = ssub.s32 %s7, 1
    %s13 = ssub.s32 %s7, 2
    %s14 = sadd.s32 %s7, 1
    %s15 = ssub.s32 %s7, %s14
    %p16 = scmp.eq.s32.totalorder %s15, 0
    %s18 = sadd.s32 %s17, 1
    %s19 = scalar_select %p16, %s17, %s18
    %p22 = pneg %p16
    %p23 = scmp.eq.s32.totalorder %s7, 1
    %p24 = por %p22, %p23
    %p25 = scmp.ne.s32.totalorder %s17, %s20
    %p26 = scmp.eq.s32.totalorder %s7, 0
    %p27 = por %p25, %p26
    %p28 = scmp.ne.s32.totalorder %s17, %s20
    %p29 = scmp.eq.s32.totalorder %s12, 1
    %p30 = por %p28, %p29
    %p31 = scmp.ne.s32.totalorder %s20, %s21
    %p32 = scmp.eq.s32.totalorder %s12, 0
    %p33 = por %p31, %p32
    %p34 = scmp.ne.s32.totalorder %s20, %s21
    %p35 = scmp.eq.s32.totalorder %s13, 1
    %p36 = por %p34, %p35
    %p38 = scmp.ne.s32.totalorder %s21, %s37
    %p39 = scmp.eq.s32.totalorder %s13, 0
    %p40 = por %p38, %p39
    %s41 = ssub.s32 %s7, %s14
    %p42 = scmp.eq.s32.totalorder %s41, 0
    %s44 = sadd.s32 %s43, 1
    %s45 = scalar_select %p42, %s43, %s44
    %p48 = pneg %p42
    %p49 = scmp.eq.s32.totalorder %s7, 1
    %p50 = por %p48, %p49
    %p51 = scmp.ne.s32.totalorder %s43, %s46
    %p52 = scmp.eq.s32.totalorder %s7, 0
    %p53 = por %p51, %p52
    %p54 = scmp.ne.s32.totalorder %s43, %s46
    %p55 = scmp.eq.s32.totalorder %s12, 1
    %p56 = por %p54, %p55
    %p57 = scmp.ne.s32.totalorder %s46, %s47
    %p58 = scmp.eq.s32.totalorder %s12, 0
    %p59 = por %p57, %p58
    %p60 = scmp.ne.s32.totalorder %s46, %s47
    %p61 = scmp.eq.s32.totalorder %s13, 1
    %p62 = por %p60, %p61
    %p64 = scmp.ne.s32.totalorder %s47, %s63
    %p65 = scmp.eq.s32.totalorder %s13, 0
    %p66 = por %p64, %p65
    %p67 = scmp.le.s32.totalorder 1, %s7
    %p68 = scmp.lt.s32.totalorder %s7, 3
    %p69 = pnand %p67, %p68
    %p70 = pneg %p69
    // Predicated region
    $region9: #{hswish.1} parent=5 // pred_check
      _
    $region10: #{hswish.1} parent=5 // pred_check_branch
      %72 = sbr.rel (%p69) target = $region12
    $region11: #{hswish.1} parent=5 // pred_region
      %s73 = ssub.s32 %s7, 1
    $region12: #{hswish.1} parent=5 // pred_fallthru
      _
    %p74 = scmp.lt.s32.totalorder %s7, 2
    // Predicated region
    $region13: #{hswish.1} parent=5 // pred_check
      %p75 = pneg %p74
    $region14: #{hswish.1} parent=5 // pred_check_branch
      %77 = sbr.rel (%p75) target = $region16
    $region15: #{hswish.1} parent=5 // pred_region
      // Predicated region
      $region17: #{hswish.1} parent=15 // pred_check
        %p78 = pneg %p27
      $region18: #{hswish.1} parent=15 // pred_check_branch
        %80 = sbr.rel (%p78) target = $region20
      $region19: #{hswish.1} parent=15 // pred_region
        %p81 = scmp.lt.s32.totalorder %s7, 1
        %s82 = scalar_select %p81, %s7, 1
        %s83 = smul.addr %s82, 8
        %s84 = scalar_lea.vmem %s0, %s83
      $region20: #{hswish.1} parent=15 // pred_fallthru
        _
    $region16: #{hswish.1} parent=5 // pred_fallthru
      _
    %p85 = scmp.le.s32.totalorder 1, %s7
    %p86 = scmp.lt.s32.totalorder %s7, 3
    %p87 = pnand %p85, %p86
    %p88 = pneg %p87
    // Predicated region
    $region21: #{hswish.1} parent=5 // pred_check
      _
    $region22: #{hswish.1} parent=5 // pred_check_branch
      %90 = sbr.rel (%p87) target = $region24
    $region23: #{hswish.1} parent=5 // pred_region
      %s91 = ssub.s32 %s7, 1
      %p92 = scmp.lt.s32.totalorder %s12, 1
      %s93 = scalar_select %p92, %s12, 1
      %s94 = smul.addr %s93, 8
      %s95 = scalar_lea.vmem %s0, %s94
      %p96 = pneg %p33
      %p97 = pneg %p30
      %p98 = pneg %p59
      %p99 = pneg %p56
      %p100 = scmp.lt.s32.totalorder %s12, 1
      %s101 = scalar_select %p100, %s12, 1
      %s102 = smul.addr %s101, 8
      %s103 = scalar_lea.vmem %s1, %s102
      %p104 = scmp.lt.s32.totalorder %s12, 1
      %s105 = scalar_select %p104, %s12, 1
      %s106 = smul.addr %s105, 8
      %s107 = scalar_lea.vmem %s0, %s106
      %p108 = scmp.lt.s32.totalorder %s12, 1
      %s109 = scalar_select %p108, %s12, 1
      %s110 = smul.addr %s109, 8
      %s111 = scalar_lea.vmem %s1, %s110
      %v112 = vld [vmem:[%s107] sm:$0xff]
      %v113 = vadd.f32 %v112, 3.0
      %v114 = vmax.f32 %v113, 0.0
      %v115 = vmin.f32 %v114, 6.0
      %v116 = vmul.f32 %v112, %v115
      %v117 = vmul.f32 %v116, 0.16666667
      %118 = vst [vmem:[%s111] sm:$0xff] %v117
      %p119 = scmp.lt.s32.totalorder %s12, 1
      %s120 = scalar_select %p119, %s12, 1
      %s121 = smul.addr %s120, 8
      %s122 = scalar_lea.vmem %s1, %s121
      // Predicated region
      $region25: #{hswish.1} parent=23 // pred_check
        %p123 = pneg %p56
      $region26: #{hswish.1} parent=23 // pred_check_branch
        %125 = sbr.rel (%p123) target = $region28
      $region27: #{hswish.1} parent=23 // pred_region
        _
      $region28: #{hswish.1} parent=23 // pred_fallthru
        _
    $region24: #{hswish.1} parent=5 // pred_fallthru
      _
    %p126 = scmp.le.s32.totalorder 2, %s7
    // Predicated region
    $region29: #{hswish.1} parent=5 // pred_check
      %p127 = pneg %p126
    $region30: #{hswish.1} parent=5 // pred_check_branch
      %129 = sbr.rel (%p127) target = $region32
    $region31: #{hswish.1} parent=5 // pred_region
      %s130 = ssub.s32 %s7, 2
      // Predicated region
      $region33: #{hswish.1} parent=31 // pred_check
        %p131 = pneg %p62
      $region34: #{hswish.1} parent=31 // pred_check_branch
        %133 = sbr.rel (%p131) target = $region36
      $region35: #{hswish.1} parent=31 // pred_region
        %p134 = scmp.lt.s32.totalorder %s13, 1
        %s135 = scalar_select %p134, %s13, 1
        %s136 = smul.addr %s135, 8
        %s137 = scalar_lea.vmem %s1, %s136
      $region36: #{hswish.1} parent=31 // pred_fallthru
        _
    $region32: #{hswish.1} parent=5 // pred_fallthru
      _
  $region6: #{hswish.1} parent=0 // loop_footer
    %s11 = sadd.s32 1, %s7
  $region7: #{hswish.1} parent=0 // loop_footer_branch
    %6 = sbr.rel target = $region3
  $region8: #{hswish.1} parent=0 // loop_exit
    _

</llo_original>
